<compile_context>
chip_gen: v6e
topology: v6e:2x2x1
jax: 0.10.0
libtpu: 0.0.40
codegen_flags: <defaults>
</compile_context>

<pallas_src>
import functools
import math

import jax
import jax.numpy as jnp
from jax.experimental import pallas as pl
from jax.experimental.pallas import tpu as pltpu


def _round_up(v, m):
    return ((v + m - 1) // m) * m


def gcn_fused_kernel(embed_dim, a_ref, x_ref, adjb_ref,
                     w1_ref, b1_ref, w2_ref, b2_ref, w3_ref, b3_ref,
                     o_ref):
    """Fused 3-layer GCN forward for one row block (whole batches per block).

    a_ref    : (1,)       SMEM  f32  PReLU slope
    x_ref    : (Mb, L2)   VMEM  f32  input rows; lanes [0, E) hold x, rest 0
    adjb_ref : (Mb, Mb)   VMEM  bf16 block-diagonal adjacency kron(I_Bb, adj)
    w*_ref   : bf16 lane-padded weights;  b*_ref : f32 lane-padded biases
    o_ref    : (Mb, Lo)   VMEM  f32  lane-dense output (valid lanes [0, E))
    """
    E = embed_dim
    a = a_ref[0]                           # PReLU slope, read once from SMEM
    xp = x_ref[...]                        # (Mb, L2) f32
    adj_blk = adjb_ref[...]                # (Mb, Mb) bf16
    Lo = o_ref.shape[-1]

    # Skip tensors: torch `x_init.repeat(1, 1, 2)` == [x | x]. One XLU roll +
    # one VALU add (lanes >= E of xp are zero and 2E <= L2, so no wraparound).
    skip12 = xp + pltpu.roll(xp, shift=E, axis=1)   # [x | x | 0...] (Mb, L2)
    skip3 = xp[:, :Lo]                               # [x | 0...]     (Mb, Lo)

    bf16 = jnp.bfloat16

    def layer(h, w_ref, b_ref, skip):
        # Feature matmul: bf16 MXU inputs, f32 accumulation. One lane-dense
        # pass over the whole row block.
        support = jnp.dot(h.astype(bf16), w_ref[...],
                          preferred_element_type=jnp.float32)
        # adj mix: block-diagonal adjacency applies adj to every batch in the
        # block in ONE MXU pass (no per-batch loop, no axis-0 concat).
        mixed = jnp.dot(adj_blk, support.astype(bf16),
                        preferred_element_type=jnp.float32)
        out = mixed + b_ref[...] + skip                  # f32 VPU epilogue
        return jnp.where(out > 0, out, a * out)          # PReLU (f32)

    h = layer(xp, w1_ref, b1_ref, skip12)
    h = layer(h, w2_ref, b2_ref, skip12)
    h = layer(h, w3_ref, b3_ref, skip3)
    o_ref[...] = h.astype(o_ref.dtype)


def gcn_forward(x, adj, params, num_nodes, *, target_block_rows=256):
    """Mirrors GCN.forward. x: (B, num_nodes*E) or (B, num_nodes, E) -> (B, N, E)."""
    B = x.shape[0]
    N = num_nodes
    x = x.reshape(B, N, -1).astype(jnp.float32)
    E = x.shape[-1]
    E2 = 2 * E
    L2 = _round_up(E2, 128)   # lane width of layer-1/2 activations (no extra
                              # contraction padding once E2 % 128 == 0)
    Lo = _round_up(E, 128)    # lane-dense width of the stored output

    # ---- row block = whole batches, >= 8 sublanes, ~target_block_rows rows --
    bpb = max(1, min(B, target_block_rows // max(N, 1)))   # batches per block
    while bpb > 1 and B % bpb != 0:
        bpb -= 1
    block_rows = bpb * N
    if B % bpb != 0 or (block_rows % 8 != 0 and block_rows != B * N):
        bpb, block_rows = B, B * N                          # fallback: 1 block
    Mb = block_rows
    n_blocks = (B * N) // Mb

    # ---- pad / cast so every MXU operand, DMA and store is lane-dense -------
    bf16 = jnp.bfloat16
    x_pad = jnp.pad(x.reshape(B * N, E), ((0, 0), (0, L2 - E)))      # (B*N, L2)

    # Block-diagonal adjacency: kron(I_bpb, adj). Applying it to a row block
    # (batch-major rows) equals per-batch adj @ support, as one 2-D matmul.
    adj_blk = jnp.kron(jnp.eye(bpb, dtype=jnp.float32),
                       adj.astype(jnp.float32)).astype(bf16)         # (Mb, Mb)

    w1p = jnp.pad(params["w1"], ((0, L2 - E), (0, L2 - E2))).astype(bf16)
    w2p = jnp.pad(params["w2"], ((0, L2 - E2), (0, L2 - E2))).astype(bf16)
    w3p = jnp.pad(params["w3"], ((0, L2 - E2), (0, Lo - E))).astype(bf16)
    b1p = jnp.pad(params["b1"], ((0, 0), (0, L2 - E2)))
    b2p = jnp.pad(params["b2"], ((0, 0), (0, L2 - E2)))
    b3p = jnp.pad(params["b3"], ((0, 0), (0, Lo - E)))

    smem_full = pl.BlockSpec(memory_space=pltpu.MemorySpace.SMEM)

    def resident(shape):
        # Constant block index across the grid -> fetched once, kept resident.
        return pl.BlockSpec(shape, lambda i: tuple(0 for _ in shape))

    out_p = pl.pallas_call(
        functools.partial(gcn_fused_kernel, E),
        out_shape=jax.ShapeDtypeStruct((B * N, Lo), jnp.float32),
        grid=(n_blocks,),
        in_specs=[smem_full,                                   # PReLU slope
                  pl.BlockSpec((Mb, L2), lambda i: (i, 0)),    # x rows (pipelined)
                  resident((Mb, Mb)),                          # block-diag adj
                  resident((L2, L2)), resident((1, L2)),       # w1, b1
                  resident((L2, L2)), resident((1, L2)),       # w2, b2
                  resident((L2, Lo)), resident((1, Lo))],      # w3, b3
        out_specs=pl.BlockSpec((Mb, Lo), lambda i: (i, 0)),
        compiler_params=pltpu.CompilerParams(
            dimension_semantics=("parallel",),
            # Budgeted for v7x (64 MiB physical per TC); safe on v5e/v6e too.
            vmem_limit_bytes=32 * 1024 * 1024,
        ),
    )(params["prelu_a"], x_pad, adj_blk, w1p, b1p, w2p, b2p, w3p, b3p)

    return out_p[:, :E].reshape(B, N, E)


def init_gcn_params(key, embed_dim):
    """Deterministic init matching GraphConvolution.reset_parameters / nn.PReLU."""
    e = embed_dim
    e2 = int(embed_dim * 2)

    def init_w(k, in_f, out_f):
        stdv = 1.0 / math.sqrt(out_f)
        return jax.random.uniform(k, (in_f, out_f), jnp.float32, -stdv, stdv)

    k1, k2, k3 = jax.random.split(key, 3)
    return {
        "w1": init_w(k1, e, e2),  "b1": jnp.zeros((1, e2), jnp.float32),
        "w2": init_w(k2, e2, e2), "b2": jnp.zeros((1, e2), jnp.float32),
        "w3": init_w(k3, e2, e),  "b3": jnp.zeros((1, e), jnp.float32),
        "prelu_a": jnp.full((1,), 0.25, jnp.float32),   # nn.PReLU() default
    }


if __name__ == "__main__":
    B, N, E = 2, 8, 32  # batch, num_nodes, embed_dim

    key = jax.random.PRNGKey(0)
    k_param, k_x, k_adj = jax.random.split(key, 3)

    params = init_gcn_params(k_param, E)

    x = jax.random.normal(k_x, (B, N * E), jnp.float32)       # flat; forward reshapes
    adj_raw = jax.random.uniform(k_adj, (N, N), jnp.float32)
    adj = adj_raw / jnp.sum(adj_raw, axis=-1, keepdims=True)  # row-normalized adjacency

    out = gcn_forward(x, adj, params, num_nodes=N)
    out = jax.block_until_ready(out)

    # Pure-JAX reference: same math as the torch module; matmul inputs use the
    # same bf16 MXU cast as the kernel, accumulation stays f32.
    bf16 = jnp.bfloat16
    a = params["prelu_a"][0]
    adj_bf = adj.astype(bf16)

    def gc(h, w, b):
        sup = jnp.matmul(h.astype(bf16), w.astype(bf16),
                         preferred_element_type=jnp.float32)
        return jnp.matmul(adj_bf, sup.astype(bf16),
                          preferred_element_type=jnp.float32) + b

    def prelu(v):
        return jnp.where(v > 0, v, a * v)

    xr = x.reshape(B, N, E)
    skip2 = jnp.concatenate([xr, xr], axis=-1)
    r = prelu(gc(xr, params["w1"], params["b1"]) + skip2)
    r = prelu(gc(r, params["w2"], params["b2"]) + skip2)
    r = prelu(gc(r, params["w3"], params["b3"]) + xr)

    assert out.shape == (B, N, E)
    assert jnp.allclose(out, r, atol=2e-3, rtol=2e-3), \
        float(jnp.max(jnp.abs(out - r)))

    print("KERNEL_OK")
</pallas_src>

<mosaic_0001>
module attributes {stable_mosaic.version = 11 : i64} {
  func.func @gcn_fused_kernel(%arg0: i32, %arg1: memref<1xf32, #tpu.memory_space<smem>>, %arg2: memref<16x128xf32, #tpu.memory_space<vmem>>, %arg3: memref<16x16xbf16, #tpu.memory_space<vmem>>, %arg4: memref<128x128xbf16, #tpu.memory_space<vmem>>, %arg5: memref<1x128xf32, #tpu.memory_space<vmem>>, %arg6: memref<128x128xbf16, #tpu.memory_space<vmem>>, %arg7: memref<1x128xf32, #tpu.memory_space<vmem>>, %arg8: memref<128x128xbf16, #tpu.memory_space<vmem>>, %arg9: memref<1x128xf32, #tpu.memory_space<vmem>>, %arg10: memref<16x128xf32, #tpu.memory_space<vmem>>) attributes {dimension_semantics = [#tpu.dimension_semantics<parallel>], iteration_bounds = array<i64: 1>, scalar_prefetch = 0 : i64, scratch_operands = 0 : i64, tpu.core_type = #tpu.core_type<tc>, window_params = [{transform_indices = @transform_0, window_bounds = array<i64: 1>}, {transform_indices = @transform_1, window_bounds = array<i64: 16, 128>}, {pipeline_mode = #tpu.pipeline_mode<synchronous>, transform_indices = @transform_2, window_bounds = array<i64: 16, 16>}, {pipeline_mode = #tpu.pipeline_mode<synchronous>, transform_indices = @transform_3, window_bounds = array<i64: 128, 128>}, {pipeline_mode = #tpu.pipeline_mode<synchronous>, transform_indices = @transform_4, window_bounds = array<i64: 1, 128>}, {pipeline_mode = #tpu.pipeline_mode<synchronous>, transform_indices = @transform_5, window_bounds = array<i64: 128, 128>}, {pipeline_mode = #tpu.pipeline_mode<synchronous>, transform_indices = @transform_6, window_bounds = array<i64: 1, 128>}, {pipeline_mode = #tpu.pipeline_mode<synchronous>, transform_indices = @transform_7, window_bounds = array<i64: 128, 128>}, {pipeline_mode = #tpu.pipeline_mode<synchronous>, transform_indices = @transform_8, window_bounds = array<i64: 1, 128>}, {transform_indices = @transform_9, window_bounds = array<i64: 16, 128>}]} {
    %c0 = arith.constant 0 : index
    %0 = memref.load %arg1[%c0] : memref<1xf32, #tpu.memory_space<smem>>
    %c0_0 = arith.constant 0 : index
    %c0_1 = arith.constant 0 : index
    %1 = vector.load %arg2[%c0_0, %c0_1] : memref<16x128xf32, #tpu.memory_space<vmem>>, vector<16x128xf32>
    %c0_2 = arith.constant 0 : index
    %c0_3 = arith.constant 0 : index
    %2 = vector.load %arg3[%c0_2, %c0_3] : memref<16x16xbf16, #tpu.memory_space<vmem>>, vector<16x16xbf16>
    %c32_i32 = arith.constant 32 : i32
    %3 = tpu.dynamic_rotate %1 by %c32_i32 dim 1 : vector<16x128xf32>, i32 -> vector<16x128xf32>
    %4 = arith.addf %1, %3 : vector<16x128xf32>
    %5 = arith.truncf %1 : vector<16x128xf32> to vector<16x128xbf16>
    %c0_4 = arith.constant 0 : index
    %c0_5 = arith.constant 0 : index
    %6 = vector.load %arg4[%c0_4, %c0_5] : memref<128x128xbf16, #tpu.memory_space<vmem>>, vector<128x128xbf16>
    %cst = arith.constant dense<0.000000e+00> : vector<16x128xf32>
    %7 = tpu.matmul %5, %6, %cst {dimension_numbers = #tpu.dot_dimension_numbers<[1], [0], [0], [1], [0, 0, 1, 1], [], []>} : vector<16x128xbf16>, vector<128x128xbf16>, vector<16x128xf32> -> vector<16x128xf32>
    %8 = arith.truncf %7 : vector<16x128xf32> to vector<16x128xbf16>
    %cst_6 = arith.constant dense<0.000000e+00> : vector<16x128xf32>
    %9 = tpu.matmul %2, %8, %cst_6 {dimension_numbers = #tpu.dot_dimension_numbers<[1], [0], [0], [1], [0, 0, 1, 1], [], []>} : vector<16x16xbf16>, vector<16x128xbf16>, vector<16x128xf32> -> vector<16x128xf32>
    %c0_7 = arith.constant 0 : index
    %c0_8 = arith.constant 0 : index
    %10 = vector.load %arg5[%c0_7, %c0_8] : memref<1x128xf32, #tpu.memory_space<vmem>>, vector<1x128xf32>
    %11 = vector.broadcast %10 : vector<1x128xf32> to vector<16x128xf32>
    %12 = arith.addf %9, %11 : vector<16x128xf32>
    %13 = arith.addf %12, %4 : vector<16x128xf32>
    %cst_9 = arith.constant 0.000000e+00 : f32
    %14 = vector.broadcast %cst_9 : f32 to vector<16x128xf32>
    %15 = arith.cmpf ogt, %13, %14 : vector<16x128xf32>
    %16 = vector.broadcast %0 : f32 to vector<16x128xf32>
    %17 = arith.mulf %16, %13 : vector<16x128xf32>
    %18 = arith.select %15, %13, %17 : vector<16x128xi1>, vector<16x128xf32>
    %19 = arith.truncf %18 : vector<16x128xf32> to vector<16x128xbf16>
    %c0_10 = arith.constant 0 : index
    %c0_11 = arith.constant 0 : index
    %20 = vector.load %arg6[%c0_10, %c0_11] : memref<128x128xbf16, #tpu.memory_space<vmem>>, vector<128x128xbf16>
    %cst_12 = arith.constant dense<0.000000e+00> : vector<16x128xf32>
    %21 = tpu.matmul %19, %20, %cst_12 {dimension_numbers = #tpu.dot_dimension_numbers<[1], [0], [0], [1], [0, 0, 1, 1], [], []>} : vector<16x128xbf16>, vector<128x128xbf16>, vector<16x128xf32> -> vector<16x128xf32>
    %22 = arith.truncf %21 : vector<16x128xf32> to vector<16x128xbf16>
    %cst_13 = arith.constant dense<0.000000e+00> : vector<16x128xf32>
    %23 = tpu.matmul %2, %22, %cst_13 {dimension_numbers = #tpu.dot_dimension_numbers<[1], [0], [0], [1], [0, 0, 1, 1], [], []>} : vector<16x16xbf16>, vector<16x128xbf16>, vector<16x128xf32> -> vector<16x128xf32>
    %c0_14 = arith.constant 0 : index
    %c0_15 = arith.constant 0 : index
    %24 = vector.load %arg7[%c0_14, %c0_15] : memref<1x128xf32, #tpu.memory_space<vmem>>, vector<1x128xf32>
    %25 = vector.broadcast %24 : vector<1x128xf32> to vector<16x128xf32>
    %26 = arith.addf %23, %25 : vector<16x128xf32>
    %27 = arith.addf %26, %4 : vector<16x128xf32>
    %cst_16 = arith.constant 0.000000e+00 : f32
    %28 = vector.broadcast %cst_16 : f32 to vector<16x128xf32>
    %29 = arith.cmpf ogt, %27, %28 : vector<16x128xf32>
    %30 = vector.broadcast %0 : f32 to vector<16x128xf32>
    %31 = arith.mulf %30, %27 : vector<16x128xf32>
    %32 = arith.select %29, %27, %31 : vector<16x128xi1>, vector<16x128xf32>
    %33 = arith.truncf %32 : vector<16x128xf32> to vector<16x128xbf16>
    %c0_17 = arith.constant 0 : index
    %c0_18 = arith.constant 0 : index
    %34 = vector.load %arg8[%c0_17, %c0_18] : memref<128x128xbf16, #tpu.memory_space<vmem>>, vector<128x128xbf16>
    %cst_19 = arith.constant dense<0.000000e+00> : vector<16x128xf32>
    %35 = tpu.matmul %33, %34, %cst_19 {dimension_numbers = #tpu.dot_dimension_numbers<[1], [0], [0], [1], [0, 0, 1, 1], [], []>} : vector<16x128xbf16>, vector<128x128xbf16>, vector<16x128xf32> -> vector<16x128xf32>
    %36 = arith.truncf %35 : vector<16x128xf32> to vector<16x128xbf16>
    %cst_20 = arith.constant dense<0.000000e+00> : vector<16x128xf32>
    %37 = tpu.matmul %2, %36, %cst_20 {dimension_numbers = #tpu.dot_dimension_numbers<[1], [0], [0], [1], [0, 0, 1, 1], [], []>} : vector<16x16xbf16>, vector<16x128xbf16>, vector<16x128xf32> -> vector<16x128xf32>
    %c0_21 = arith.constant 0 : index
    %c0_22 = arith.constant 0 : index
    %38 = vector.load %arg9[%c0_21, %c0_22] : memref<1x128xf32, #tpu.memory_space<vmem>>, vector<1x128xf32>
    %39 = vector.broadcast %38 : vector<1x128xf32> to vector<16x128xf32>
    %40 = arith.addf %37, %39 : vector<16x128xf32>
    %41 = arith.addf %40, %1 : vector<16x128xf32>
    %cst_23 = arith.constant 0.000000e+00 : f32
    %42 = vector.broadcast %cst_23 : f32 to vector<16x128xf32>
    %43 = arith.cmpf ogt, %41, %42 : vector<16x128xf32>
    %44 = vector.broadcast %0 : f32 to vector<16x128xf32>
    %45 = arith.mulf %44, %41 : vector<16x128xf32>
    %46 = arith.select %43, %41, %45 : vector<16x128xi1>, vector<16x128xf32>
    %c0_24 = arith.constant 0 : index
    %c0_25 = arith.constant 0 : index
    %47 = vector.load %arg10[%c0_24, %c0_25] : memref<16x128xf32, #tpu.memory_space<vmem>>, vector<16x128xf32>
    tpu.vector_store %arg10[%c0_24, %c0_25], %46 {strides = array<i32>} : memref<16x128xf32, #tpu.memory_space<vmem>>, vector<16x128xf32>,
    return
  }
  func.func @transform_0(%arg0: i32) -> i32 {
    %c0_i32 = arith.constant 0 : i32
    %c0_i32_0 = arith.constant 0 : i32
    return %c0_i32 : i32
  }
  func.func @transform_1(%arg0: i32) -> (i32, i32) {
    %c0_i32 = arith.constant 0 : i32
    %c0_i32_0 = arith.constant 0 : i32
    return %arg0, %c0_i32 : i32, i32
  }
  func.func @transform_2(%arg0: i32) -> (i32, i32) {
    %c0_i32 = arith.constant 0 : i32
    %c0_i32_0 = arith.constant 0 : i32
    %c0_i32_1 = arith.constant 0 : i32
    return %c0_i32, %c0_i32_0 : i32, i32
  }
  func.func @transform_3(%arg0: i32) -> (i32, i32) {
    %c0_i32 = arith.constant 0 : i32
    %c0_i32_0 = arith.constant 0 : i32
    %c0_i32_1 = arith.constant 0 : i32
    return %c0_i32, %c0_i32_0 : i32, i32
  }
  func.func @transform_4(%arg0: i32) -> (i32, i32) {
    %c0_i32 = arith.constant 0 : i32
    %c0_i32_0 = arith.constant 0 : i32
    %c0_i32_1 = arith.constant 0 : i32
    return %c0_i32, %c0_i32_0 : i32, i32
  }
  func.func @transform_5(%arg0: i32) -> (i32, i32) {
    %c0_i32 = arith.constant 0 : i32
    %c0_i32_0 = arith.constant 0 : i32
    %c0_i32_1 = arith.constant 0 : i32
    return %c0_i32, %c0_i32_0 : i32, i32
  }
  func.func @transform_6(%arg0: i32) -> (i32, i32) {
    %c0_i32 = arith.constant 0 : i32
    %c0_i32_0 = arith.constant 0 : i32
    %c0_i32_1 = arith.constant 0 : i32
    return %c0_i32, %c0_i32_0 : i32, i32
  }
  func.func @transform_7(%arg0: i32) -> (i32, i32) {
    %c0_i32 = arith.constant 0 : i32
    %c0_i32_0 = arith.constant 0 : i32
    %c0_i32_1 = arith.constant 0 : i32
    return %c0_i32, %c0_i32_0 : i32, i32
  }
  func.func @transform_8(%arg0: i32) -> (i32, i32) {
    %c0_i32 = arith.constant 0 : i32
    %c0_i32_0 = arith.constant 0 : i32
    %c0_i32_1 = arith.constant 0 : i32
    return %c0_i32, %c0_i32_0 : i32, i32
  }
  func.func @transform_9(%arg0: i32) -> (i32, i32) {
    %c0_i32 = arith.constant 0 : i32
    %c0_i32_0 = arith.constant 0 : i32
    return %arg0, %c0_i32 : i32, i32
  }
}

</mosaic_0001>

<llo_original>
// kernel: tpu_custom_call.1
$region0: #{tpu_custom_call.1}
  #allocation0 [shape = 'u32[]', space=smem, size = 0x4, offset = 0x4, fixed_abs, tag = 'smem constant byte address 0x4 - core index']
  #allocation1 [shape = 'u32[144,128]{1,0:T(1,128)}', space=vmem, size = 0x12000, scoped, tag = 'internal scratch']
  #allocation2 [shape = 'f32[1]{0:T(128)S(6)}', space=smem, size = 0x200, scoped, tag = 'scoped memory for tpu_custom_call.1']
  %s0 = inlined_call_operand.<no memory space> [shape: f32[1], index: 0, kind: input, shape index: {}]
  %s1 = inlined_call_operand.hbm [shape: f32[16,128], index: 1, kind: input, shape index: {}]
  %s2 = inlined_call_operand.hbm [shape: bf16[16,16], index: 2, kind: input, shape index: {}]
  %s3 = inlined_call_operand.hbm [shape: bf16[128,128], index: 3, kind: input, shape index: {}]
  %s4 = inlined_call_operand.vmem [shape: f32[1,128], index: 4, kind: input, shape index: {}]
  %s5 = inlined_call_operand.hbm [shape: bf16[128,128], index: 5, kind: input, shape index: {}]
  %s6 = inlined_call_operand.vmem [shape: f32[1,128], index: 6, kind: input, shape index: {}]
  %s7 = inlined_call_operand.hbm [shape: bf16[128,128], index: 7, kind: input, shape index: {}]
  %s8 = inlined_call_operand.vmem [shape: f32[1,128], index: 8, kind: input, shape index: {}]
  %s9 = inlined_call_operand.hbm [shape: f32[16,128], index: 9, kind: output, shape index: {}]
  %s10 = sld [smem:[#allocation0]]
  $region66: #{tpu_custom_call.1} parent=0
    _
  %s12 = ssub.s32 1, %s10
  %s13 = scalar_select 0, %s12, %s10
  %14 = sst [smem:[#allocation2]] %s0
  $region1: #{tpu_custom_call.1} parent=0
    #allocation3 [shape = 'u8[8192]{0}', space=vmem, size = 0x2000, scoped, tag = 'input window, operand 1, single buffered']
    #allocation4 [shape = 's32[1]{0}', space=sflag, size = 0x4, scoped, tag = 'scoped memory for tpu_custom_call.1']
    #allocation5 [shape = 's32[1]{0}', space=sflag, size = 0x4, scoped, tag = 'scoped memory for tpu_custom_call.1']
    #allocation6 [shape = 'u8[4096]{0}', space=vmem, size = 0x1000, scoped, tag = 'input window, operand 2, single buffered']
    #allocation7 [shape = 's32[1]{0}', space=sflag, size = 0x4, scoped, tag = 'scoped memory for tpu_custom_call.1']
    #allocation8 [shape = 'u8[32768]{0}', space=vmem, size = 0x8000, scoped, tag = 'input window, operand 3, single buffered']
    #allocation9 [shape = 'u8[32768]{0}', space=vmem, size = 0x8000, scoped, tag = 'input window, operand 5, single buffered']
    #allocation10 [shape = 's32[1]{0}', space=sflag, size = 0x4, scoped, tag = 'scoped memory for tpu_custom_call.1']
    #allocation11 [shape = 'u8[32768]{0}', space=vmem, size = 0x8000, scoped, tag = 'input window, operand 7, single buffered']
    #allocation12 [shape = 'u8[8192]{0}', space=vmem, size = 0x2000, scoped, tag = 'output window, operand 0, single buffered']
    %15 = vsyncpa [#allocation4], 0
    %16 = vsyncpa [#allocation7], 0
    %17 = vsyncpa [#allocation10], 0
    %18 = vsyncpa [#allocation5], 0
    // Predicated region
    $region2: #{tpu_custom_call.1} parent=1 // pred_check
      _
    $region3: #{tpu_custom_call.1} parent=1 // pred_check_branch
      %20 = sbr.rel (0) target = $region5
    $region4: #{tpu_custom_call.1} parent=1 // pred_region
      _
    $region5: #{tpu_custom_call.1} parent=1 // pred_fallthru
      _
    // Predicated region
    $region6: #{tpu_custom_call.1} parent=1 // pred_check
      _
    $region7: #{tpu_custom_call.1} parent=1 // pred_check_branch
      %22 = sbr.rel (0) target = $region9
    $region8: #{tpu_custom_call.1} parent=1 // pred_region
      %s24 = ssub.s32 256, 256
      %25 = vsyncadd [#allocation4], %s24
      %s26 = sshll.u32 [#allocation3], 4
      %s27 = int_to_ptr.vmem [resolvable:$true] %s26
      %32 = dma.hbm_to_vmem [thread:$0]  %s1, 256, %s27, [#allocation4], 128, 128, 8
    $region9: #{tpu_custom_call.1} parent=1 // pred_fallthru
      _
    // Predicated region
    $region10: #{tpu_custom_call.1} parent=1 // pred_check
      _
    $region11: #{tpu_custom_call.1} parent=1 // pred_check_branch
      %34 = sbr.rel (0) target = $region13
    $region12: #{tpu_custom_call.1} parent=1 // pred_region
      %s36 = ssub.s32 128, 128
      %37 = vsyncadd [#allocation7], %s36
      %s38 = sshll.u32 [#allocation6], 4
      %s39 = int_to_ptr.vmem [resolvable:$true] %s38
      %44 = dma.hbm_to_vmem [thread:$0]  %s2, 128, %s39, [#allocation7], 64, 64, 4
    $region13: #{tpu_custom_call.1} parent=1 // pred_fallthru
      _
    // Predicated region
    $region14: #{tpu_custom_call.1} parent=1 // pred_check
      _
    $region15: #{tpu_custom_call.1} parent=1 // pred_check_branch
      %46 = sbr.rel (0) target = $region17
    $region16: #{tpu_custom_call.1} parent=1 // pred_region
      %s48 = ssub.s32 1024, 1024
      %49 = vsyncadd [#allocation7], %s48
      %s50 = sshll.u32 [#allocation8], 4
      %s51 = int_to_ptr.vmem [resolvable:$true] %s50
      %56 = dma.hbm_to_vmem [thread:$0]  %s3, 1024, %s51, [#allocation7], 64, 64, 4
    $region17: #{tpu_custom_call.1} parent=1 // pred_fallthru
      _
    // Predicated region
    $region18: #{tpu_custom_call.1} parent=1 // pred_check
      _
    $region19: #{tpu_custom_call.1} parent=1 // pred_check_branch
      %58 = sbr.rel (0) target = $region21
    $region20: #{tpu_custom_call.1} parent=1 // pred_region
      _
    $region21: #{tpu_custom_call.1} parent=1 // pred_fallthru
      _
    // Predicated region
    $region22: #{tpu_custom_call.1} parent=1 // pred_check
      _
    $region23: #{tpu_custom_call.1} parent=1 // pred_check_branch
      %60 = sbr.rel (0) target = $region25
    $region24: #{tpu_custom_call.1} parent=1 // pred_region
      %s62 = ssub.s32 1024, 1024
      %63 = vsyncadd [#allocation10], %s62
      %s64 = sshll.u32 [#allocation9], 4
      %s65 = int_to_ptr.vmem [resolvable:$true] %s64
      %70 = dma.hbm_to_vmem [thread:$0]  %s5, 1024, %s65, [#allocation10], 64, 64, 4
    $region25: #{tpu_custom_call.1} parent=1 // pred_fallthru
      _
    // Predicated region
    $region26: #{tpu_custom_call.1} parent=1 // pred_check
      _
    $region27: #{tpu_custom_call.1} parent=1 // pred_check_branch
      %72 = sbr.rel (0) target = $region29
    $region28: #{tpu_custom_call.1} parent=1 // pred_region
      _
    $region29: #{tpu_custom_call.1} parent=1 // pred_fallthru
      _
    // Predicated region
    $region30: #{tpu_custom_call.1} parent=1 // pred_check
      _
    $region31: #{tpu_custom_call.1} parent=1 // pred_check_branch
      %74 = sbr.rel (0) target = $region33
    $region32: #{tpu_custom_call.1} parent=1 // pred_region
      %s76 = ssub.s32 1024, 1024
      %77 = vsyncadd [#allocation10], %s76
      %s78 = sshll.u32 [#allocation11], 4
      %s79 = int_to_ptr.vmem [resolvable:$true] %s78
      %84 = dma.hbm_to_vmem [thread:$0]  %s7, 1024, %s79, [#allocation10], 64, 64, 4
    $region33: #{tpu_custom_call.1} parent=1 // pred_fallthru
      _
    // Predicated region
    $region34: #{tpu_custom_call.1} parent=1 // pred_check
      _
    $region35: #{tpu_custom_call.1} parent=1 // pred_check_branch
      %86 = sbr.rel (0) target = $region37
    $region36: #{tpu_custom_call.1} parent=1 // pred_region
      _
    $region37: #{tpu_custom_call.1} parent=1 // pred_fallthru
      _
    // Predicated region
    $region38: #{tpu_custom_call.1} parent=1 // pred_check
      _
    $region39: #{tpu_custom_call.1} parent=1 // pred_check_branch
      %88 = sbr.rel (0) target = $region41
    $region40: #{tpu_custom_call.1} parent=1 // pred_region
      %89 = dma.done [#allocation4], 256
    $region41: #{tpu_custom_call.1} parent=1 // pred_fallthru
      _
    // Predicated region
    $region42: #{tpu_custom_call.1} parent=1 // pred_check
      _
    $region43: #{tpu_custom_call.1} parent=1 // pred_check_branch
      %91 = sbr.rel (0) target = $region45
    $region44: #{tpu_custom_call.1} parent=1 // pred_region
      %92 = dma.done [#allocation7], 128
    $region45: #{tpu_custom_call.1} parent=1 // pred_fallthru
      _
    // Predicated region
    $region46: #{tpu_custom_call.1} parent=1 // pred_check
      _
    $region47: #{tpu_custom_call.1} parent=1 // pred_check_branch
      %94 = sbr.rel (0) target = $region49
    $region48: #{tpu_custom_call.1} parent=1 // pred_region
      %95 = dma.done [#allocation7], 1024
    $region49: #{tpu_custom_call.1} parent=1 // pred_fallthru
      _
    // Predicated region
    $region50: #{tpu_custom_call.1} parent=1 // pred_check
      _
    $region51: #{tpu_custom_call.1} parent=1 // pred_check_branch
      %97 = sbr.rel (0) target = $region53
    $region52: #{tpu_custom_call.1} parent=1 // pred_region
      %98 = dma.done [#allocation10], 1024
    $region53: #{tpu_custom_call.1} parent=1 // pred_fallthru
      _
    // Predicated region
    $region54: #{tpu_custom_call.1} parent=1 // pred_check
      _
    $region55: #{tpu_custom_call.1} parent=1 // pred_check_branch
      %100 = sbr.rel (0) target = $region57
    $region56: #{tpu_custom_call.1} parent=1 // pred_region
      %101 = dma.done [#allocation10], 1024
    $region57: #{tpu_custom_call.1} parent=1 // pred_fallthru
      _
    %s103 = sld [smem:[#allocation2]]
    %v104 = vld [vmem:[#allocation3] sm:$0xff]
    %v105 = vld [vmem:[#allocation3 + $0x8] sm:$0xff]
    %v106 = vld [vmem:[#allocation6] sm:$0xf]
    %v107 = vld [vmem:[#allocation6 + $0x4] sm:$0xf]
    %108 = vrot.lane.b32.xlu0 %v104, 32
    %v109 = vpop.permute.xlu0 %108
    %110 = vrot.lane.b32.xlu0 %v105, 32
    %v111 = vpop.permute.xlu0 %110
    %v112 = vadd.f32 %v104, %v109
    %v113 = vadd.f32 %v105, %v111
    %v114 = vpack.c.bf16 %v105, %v104
    %v115 = vld [vmem:[#allocation8] sm:$0xf]
    %v116 = vld [vmem:[#allocation8 + $0x4] sm:$0xf]
    %v117 = vld [vmem:[#allocation8 + $0x8] sm:$0xf]
    %v118 = vld [vmem:[#allocation8 + $0xc] sm:$0xf]
    %v119 = vld [vmem:[#allocation8 + $0x10] sm:$0xf]
    %v120 = vld [vmem:[#allocation8 + $0x14] sm:$0xf]
    %v121 = vld [vmem:[#allocation8 + $0x18] sm:$0xf]
    %v122 = vld [vmem:[#allocation8 + $0x1c] sm:$0xf]
    %v123 = vld [vmem:[#allocation8 + $0x20] sm:$0xf]
    %v124 = vld [vmem:[#allocation8 + $0x24] sm:$0xf]
    %v125 = vld [vmem:[#allocation8 + $0x28] sm:$0xf]
    %v126 = vld [vmem:[#allocation8 + $0x2c] sm:$0xf]
    %v127 = vld [vmem:[#allocation8 + $0x30] sm:$0xf]
    %v128 = vld [vmem:[#allocation8 + $0x34] sm:$0xf]
    %v129 = vld [vmem:[#allocation8 + $0x38] sm:$0xf]
    %v130 = vld [vmem:[#allocation8 + $0x3c] sm:$0xf]
    %v147 = vunpack.c.l.b16 %v115
    %v148 = vunpack.c.l.b16 %v116
    %v149 = vunpack.c.l.b16 %v117
    %v150 = vunpack.c.l.b16 %v118
    %v151 = vunpack.c.l.b16 %v119
    %v152 = vunpack.c.l.b16 %v120
    %v153 = vunpack.c.l.b16 %v121
    %v154 = vunpack.c.l.b16 %v122
    %v155 = vunpack.c.l.b16 %v123
    %v156 = vunpack.c.l.b16 %v124
    %v157 = vunpack.c.l.b16 %v125
    %v158 = vunpack.c.l.b16 %v126
    %v159 = vunpack.c.l.b16 %v127
    %v160 = vunpack.c.l.b16 %v128
    %v161 = vunpack.c.l.b16 %v129
    %v162 = vunpack.c.l.b16 %v130
    %v163 = vpack.c.b16 %v148, %v147
    %v164 = vpack.c.b16 %v150, %v149
    %v165 = vpack.c.b16 %v152, %v151
    %v166 = vpack.c.b16 %v154, %v153
    %v167 = vpack.c.b16 %v156, %v155
    %v168 = vpack.c.b16 %v158, %v157
    %v169 = vpack.c.b16 %v160, %v159
    %v170 = vpack.c.b16 %v162, %v161
    %179 = vmatprep.subr.bf16.mxu0 0
    %180 = vmatpush1.bf16.msra.mxu0 %v170
    %181 = vmatprep.subr.bf16.mxu0 0
    %182 = vmatpush1.bf16.msra.mxu0 %v169
    %183 = vmatprep.subr.bf16.mxu0 0
    %184 = vmatpush1.bf16.msra.mxu0 %v168
    %185 = vmatprep.subr.bf16.mxu0 0
    %186 = vmatpush1.bf16.msra.mxu0 %v167
    %187 = vmatprep.subr.bf16.mxu0 0
    %188 = vmatpush1.bf16.msra.mxu0 %v166
    %189 = vmatprep.subr.bf16.mxu0 0
    %190 = vmatpush1.bf16.msra.mxu0 %v165
    %191 = vmatprep.subr.bf16.mxu0 0
    %192 = vmatpush1.bf16.msra.mxu0 %v164
    %193 = vmatprep.subr.bf16.mxu0 0
    %194 = vmatpush1.bf16.msra.mxu0 %v163
    %195 = vmatprep.subr.bf16.mxu0 0
    %196 = vmatpush2.bf16.msra.mxu0 0
    %197 = vmatprep.subr.bf16.mxu0 0
    %198 = vmatpush2.bf16.msra.mxu0 0
    %199 = vmatprep.subr.bf16.mxu0 0
    %200 = vmatpush2.bf16.msra.mxu0 0
    %201 = vmatprep.subr.bf16.mxu0 0
    %202 = vmatpush2.bf16.msra.mxu0 0
    %203 = vmatprep.subr.bf16.mxu0 0
    %204 = vmatpush2.bf16.msra.mxu0 0
    %205 = vmatprep.subr.bf16.mxu0 0
    %206 = vmatpush2.bf16.msra.mxu0 0
    %207 = vmatprep.subr.bf16.mxu0 0
    %208 = vmatpush2.bf16.msra.mxu0 0
    %209 = vmatprep.subr.bf16.mxu0 0
    %210 = vmatpush2.bf16.msra.mxu0 0
    %211 = vmatprep.mubr.bf16.mxu0 0
    %212 = vmatmul.mubr.bf16.gmra.mxu0 %v114
    %v213 = vpop.f32.mrf.mxu0
    %v214 = vadd.f32 0.0, %v213
    %v215 = vpop.f32.mrf.mxu0
    %v216 = vpop.f32.mrf.mxu0
    %v217 = vadd.f32 0.0, %v216
    %v218 = vpop.f32.mrf.mxu0
    %219 = vdwg.mxu0
    %v220 = vpack.c.bf16 %v217, %v214
    %v221 = vld [vmem:[%s4] sm:$0x1]
    %v223 = vlaneseq
    %v224 = vshrl.u32 %v223, 7
    %v225 = vsub.s32 0, %v224
    %v226 = vrot.slane %v221, %v225
    %v230 = vunpack.c.l.b16 %v106
    %v231 = vunpack.c.l.b16 %v107
    %v232 = vpack.c.b16 %v231, %v230
    %vm233 = vcmask 130048
    %v235 = vsel %vm233, %v232, 0
    %237 = vmatprep.subr.bf16.mxu0 0
    %238 = vmatpush1.bf16.msra.mxu0 0
    %239 = vmatprep.subr.bf16.mxu0 0
    %240 = vmatpush1.bf16.msra.mxu0 0
    %241 = vmatprep.subr.bf16.mxu0 0
    %242 = vmatpush1.bf16.msra.mxu0 0
    %243 = vmatprep.subr.bf16.mxu0 0
    %244 = vmatpush1.bf16.msra.mxu0 0
    %245 = vmatprep.subr.bf16.mxu0 0
    %246 = vmatpush1.bf16.msra.mxu0 0
    %247 = vmatprep.subr.bf16.mxu0 0
    %248 = vmatpush1.bf16.msra.mxu0 0
    %249 = vmatprep.subr.bf16.mxu0 0
    %250 = vmatpush1.bf16.msra.mxu0 0
    %251 = vmatprep.subr.bf16.mxu0 0
    %252 = vmatpush1.bf16.msra.mxu0 %v220
    %253 = vmatprep.subr.bf16.mxu0 0
    %254 = vmatpush2.bf16.msra.mxu0 0
    %255 = vmatprep.subr.bf16.mxu0 0
    %256 = vmatpush2.bf16.msra.mxu0 0
    %257 = vmatprep.subr.bf16.mxu0 0
    %258 = vmatpush2.bf16.msra.mxu0 0
    %259 = vmatprep.subr.bf16.mxu0 0
    %260 = vmatpush2.bf16.msra.mxu0 0
    %261 = vmatprep.subr.bf16.mxu0 0
    %262 = vmatpush2.bf16.msra.mxu0 0
    %263 = vmatprep.subr.bf16.mxu0 0
    %264 = vmatpush2.bf16.msra.mxu0 0
    %265 = vmatprep.subr.bf16.mxu0 0
    %266 = vmatpush2.bf16.msra.mxu0 0
    %267 = vmatprep.subr.bf16.mxu0 0
    %268 = vmatpush2.bf16.msra.mxu0 0
    %269 = vmatprep.mubr.bf16.mxu0 0
    %270 = vmatmul.mubr.bf16.gmra.mxu0 %v235
    %v271 = vpop.f32.mrf.mxu0
    %v272 = vadd.f32 %v226, %v271
    %v273 = vpop.f32.mrf.mxu0
    %v274 = vpop.f32.mrf.mxu0
    %v275 = vadd.f32 %v226, %v274
    %v276 = vpop.f32.mrf.mxu0
    %277 = vdwg.mxu0
    %v278 = vadd.f32 %v272, %v112
    %v279 = vadd.f32 %v275, %v113
    %vm280 = vcmp.gt.f32.partialorder %v278, 0.0
    %vm281 = vcmp.gt.f32.partialorder %v279, 0.0
    %v282 = vstv %s103
    %v283 = vmul.f32 %v282, %v278
    %v284 = vmul.f32 %v282, %v279
    %v285 = vsel %vm280, %v278, %v283
    %v286 = vsel %vm281, %v279, %v284
    %v287 = vpack.c.bf16 %v286, %v285
    %v288 = vld [vmem:[#allocation9] sm:$0xf]
    %v289 = vld [vmem:[#allocation9 + $0x4] sm:$0xf]
    %v290 = vld [vmem:[#allocation9 + $0x8] sm:$0xf]
    %v291 = vld [vmem:[#allocation9 + $0xc] sm:$0xf]
    %v292 = vld [vmem:[#allocation9 + $0x10] sm:$0xf]
    %v293 = vld [vmem:[#allocation9 + $0x14] sm:$0xf]
    %v294 = vld [vmem:[#allocation9 + $0x18] sm:$0xf]
    %v295 = vld [vmem:[#allocation9 + $0x1c] sm:$0xf]
    %v296 = vld [vmem:[#allocation9 + $0x20] sm:$0xf]
    %v297 = vld [vmem:[#allocation9 + $0x24] sm:$0xf]
    %v298 = vld [vmem:[#allocation9 + $0x28] sm:$0xf]
    %v299 = vld [vmem:[#allocation9 + $0x2c] sm:$0xf]
    %v300 = vld [vmem:[#allocation9 + $0x30] sm:$0xf]
    %v301 = vld [vmem:[#allocation9 + $0x34] sm:$0xf]
    %v302 = vld [vmem:[#allocation9 + $0x38] sm:$0xf]
    %v303 = vld [vmem:[#allocation9 + $0x3c] sm:$0xf]
    %v320 = vunpack.c.l.b16 %v288
    %v321 = vunpack.c.l.b16 %v289
    %v322 = vunpack.c.l.b16 %v290
    %v323 = vunpack.c.l.b16 %v291
    %v324 = vunpack.c.l.b16 %v292
    %v325 = vunpack.c.l.b16 %v293
    %v326 = vunpack.c.l.b16 %v294
    %v327 = vunpack.c.l.b16 %v295
    %v328 = vunpack.c.l.b16 %v296
    %v329 = vunpack.c.l.b16 %v297
    %v330 = vunpack.c.l.b16 %v298
    %v331 = vunpack.c.l.b16 %v299
    %v332 = vunpack.c.l.b16 %v300
    %v333 = vunpack.c.l.b16 %v301
    %v334 = vunpack.c.l.b16 %v302
    %v335 = vunpack.c.l.b16 %v303
    %v336 = vpack.c.b16 %v321, %v320
    %v337 = vpack.c.b16 %v323, %v322
    %v338 = vpack.c.b16 %v325, %v324
    %v339 = vpack.c.b16 %v327, %v326
    %v340 = vpack.c.b16 %v329, %v328
    %v341 = vpack.c.b16 %v331, %v330
    %v342 = vpack.c.b16 %v333, %v332
    %v343 = vpack.c.b16 %v335, %v334
    %352 = vmatprep.subr.bf16.mxu0 0
    %353 = vmatpush1.bf16.msra.mxu0 %v343
    %354 = vmatprep.subr.bf16.mxu0 0
    %355 = vmatpush1.bf16.msra.mxu0 %v342
    %356 = vmatprep.subr.bf16.mxu0 0
    %357 = vmatpush1.bf16.msra.mxu0 %v341
    %358 = vmatprep.subr.bf16.mxu0 0
    %359 = vmatpush1.bf16.msra.mxu0 %v340
    %360 = vmatprep.subr.bf16.mxu0 0
    %361 = vmatpush1.bf16.msra.mxu0 %v339
    %362 = vmatprep.subr.bf16.mxu0 0
    %363 = vmatpush1.bf16.msra.mxu0 %v338
    %364 = vmatprep.subr.bf16.mxu0 0
    %365 = vmatpush1.bf16.msra.mxu0 %v337
    %366 = vmatprep.subr.bf16.mxu0 0
    %367 = vmatpush1.bf16.msra.mxu0 %v336
    %368 = vmatprep.subr.bf16.mxu0 0
    %369 = vmatpush2.bf16.msra.mxu0 0
    %370 = vmatprep.subr.bf16.mxu0 0
    %371 = vmatpush2.bf16.msra.mxu0 0
    %372 = vmatprep.subr.bf16.mxu0 0
    %373 = vmatpush2.bf16.msra.mxu0 0
    %374 = vmatprep.subr.bf16.mxu0 0
    %375 = vmatpush2.bf16.msra.mxu0 0
    %376 = vmatprep.subr.bf16.mxu0 0
    %377 = vmatpush2.bf16.msra.mxu0 0
    %378 = vmatprep.subr.bf16.mxu0 0
    %379 = vmatpush2.bf16.msra.mxu0 0
    %380 = vmatprep.subr.bf16.mxu0 0
    %381 = vmatpush2.bf16.msra.mxu0 0
    %382 = vmatprep.subr.bf16.mxu0 0
    %383 = vmatpush2.bf16.msra.mxu0 0
    %384 = vmatprep.mubr.bf16.mxu0 0
    %385 = vmatmul.mubr.bf16.gmra.mxu0 %v287
    %v386 = vpop.f32.mrf.mxu0
    %v387 = vadd.f32 0.0, %v386
    %v388 = vpop.f32.mrf.mxu0
    %v389 = vpop.f32.mrf.mxu0
    %v390 = vadd.f32 0.0, %v389
    %v391 = vpop.f32.mrf.mxu0
    %392 = vdwg.mxu0
    %v393 = vpack.c.bf16 %v390, %v387
    %v394 = vld [vmem:[%s6] sm:$0x1]
    %v396 = vlaneseq
    %v397 = vshrl.u32 %v396, 7
    %v398 = vsub.s32 0, %v397
    %v399 = vrot.slane %v394, %v398
    %401 = vmatprep.subr.bf16.mxu0 0
    %402 = vmatpush1.bf16.msra.mxu0 0
    %403 = vmatprep.subr.bf16.mxu0 0
    %404 = vmatpush1.bf16.msra.mxu0 0
    %405 = vmatprep.subr.bf16.mxu0 0
    %406 = vmatpush1.bf16.msra.mxu0 0
    %407 = vmatprep.subr.bf16.mxu0 0
    %408 = vmatpush1.bf16.msra.mxu0 0
    %409 = vmatprep.subr.bf16.mxu0 0
    %410 = vmatpush1.bf16.msra.mxu0 0
    %411 = vmatprep.subr.bf16.mxu0 0
    %412 = vmatpush1.bf16.msra.mxu0 0
    %413 = vmatprep.subr.bf16.mxu0 0
    %414 = vmatpush1.bf16.msra.mxu0 0
    %415 = vmatprep.subr.bf16.mxu0 0
    %416 = vmatpush1.bf16.msra.mxu0 %v393
    %417 = vmatprep.subr.bf16.mxu0 0
    %418 = vmatpush2.bf16.msra.mxu0 0
    %419 = vmatprep.subr.bf16.mxu0 0
    %420 = vmatpush2.bf16.msra.mxu0 0
    %421 = vmatprep.subr.bf16.mxu0 0
    %422 = vmatpush2.bf16.msra.mxu0 0
    %423 = vmatprep.subr.bf16.mxu0 0
    %424 = vmatpush2.bf16.msra.mxu0 0
    %425 = vmatprep.subr.bf16.mxu0 0
    %426 = vmatpush2.bf16.msra.mxu0 0
    %427 = vmatprep.subr.bf16.mxu0 0
    %428 = vmatpush2.bf16.msra.mxu0 0
    %429 = vmatprep.subr.bf16.mxu0 0
    %430 = vmatpush2.bf16.msra.mxu0 0
    %431 = vmatprep.subr.bf16.mxu0 0
    %432 = vmatpush2.bf16.msra.mxu0 0
    %433 = vmatprep.mubr.bf16.mxu0 0
    %434 = vmatmul.mubr.bf16.gmra.mxu0 %v235
    %v435 = vpop.f32.mrf.mxu0
    %v436 = vadd.f32 %v399, %v435
    %v437 = vpop.f32.mrf.mxu0
    %v438 = vpop.f32.mrf.mxu0
    %v439 = vadd.f32 %v399, %v438
    %v440 = vpop.f32.mrf.mxu0
    %441 = vdwg.mxu0
    %v442 = vadd.f32 %v436, %v112
    %v443 = vadd.f32 %v439, %v113
    %vm444 = vcmp.gt.f32.partialorder %v442, 0.0
    %vm445 = vcmp.gt.f32.partialorder %v443, 0.0
    %v446 = vmul.f32 %v282, %v442
    %v447 = vmul.f32 %v282, %v443
    %v448 = vsel %vm444, %v442, %v446
    %v449 = vsel %vm445, %v443, %v447
    %v450 = vpack.c.bf16 %v449, %v448
    %v451 = vld [vmem:[#allocation11] sm:$0xf]
    %v452 = vld [vmem:[#allocation11 + $0x4] sm:$0xf]
    %v453 = vld [vmem:[#allocation11 + $0x8] sm:$0xf]
    %v454 = vld [vmem:[#allocation11 + $0xc] sm:$0xf]
    %v455 = vld [vmem:[#allocation11 + $0x10] sm:$0xf]
    %v456 = vld [vmem:[#allocation11 + $0x14] sm:$0xf]
    %v457 = vld [vmem:[#allocation11 + $0x18] sm:$0xf]
    %v458 = vld [vmem:[#allocation11 + $0x1c] sm:$0xf]
    %v459 = vld [vmem:[#allocation11 + $0x20] sm:$0xf]
    %v460 = vld [vmem:[#allocation11 + $0x24] sm:$0xf]
    %v461 = vld [vmem:[#allocation11 + $0x28] sm:$0xf]
    %v462 = vld [vmem:[#allocation11 + $0x2c] sm:$0xf]
    %v463 = vld [vmem:[#allocation11 + $0x30] sm:$0xf]
    %v464 = vld [vmem:[#allocation11 + $0x34] sm:$0xf]
    %v465 = vld [vmem:[#allocation11 + $0x38] sm:$0xf]
    %v466 = vld [vmem:[#allocation11 + $0x3c] sm:$0xf]
    %v483 = vunpack.c.l.b16 %v451
    %v484 = vunpack.c.l.b16 %v452
    %v485 = vunpack.c.l.b16 %v453
    %v486 = vunpack.c.l.b16 %v454
    %v487 = vunpack.c.l.b16 %v455
    %v488 = vunpack.c.l.b16 %v456
    %v489 = vunpack.c.l.b16 %v457
    %v490 = vunpack.c.l.b16 %v458
    %v491 = vunpack.c.l.b16 %v459
    %v492 = vunpack.c.l.b16 %v460
    %v493 = vunpack.c.l.b16 %v461
    %v494 = vunpack.c.l.b16 %v462
    %v495 = vunpack.c.l.b16 %v463
    %v496 = vunpack.c.l.b16 %v464
    %v497 = vunpack.c.l.b16 %v465
    %v498 = vunpack.c.l.b16 %v466
    %v499 = vpack.c.b16 %v484, %v483
    %v500 = vpack.c.b16 %v486, %v485
    %v501 = vpack.c.b16 %v488, %v487
    %v502 = vpack.c.b16 %v490, %v489
    %v503 = vpack.c.b16 %v492, %v491
    %v504 = vpack.c.b16 %v494, %v493
    %v505 = vpack.c.b16 %v496, %v495
    %v506 = vpack.c.b16 %v498, %v497
    %515 = vmatprep.subr.bf16.mxu0 0
    %516 = vmatpush1.bf16.msra.mxu0 %v506
    %517 = vmatprep.subr.bf16.mxu0 0
    %518 = vmatpush1.bf16.msra.mxu0 %v505
    %519 = vmatprep.subr.bf16.mxu0 0
    %520 = vmatpush1.bf16.msra.mxu0 %v504
    %521 = vmatprep.subr.bf16.mxu0 0
    %522 = vmatpush1.bf16.msra.mxu0 %v503
    %523 = vmatprep.subr.bf16.mxu0 0
    %524 = vmatpush1.bf16.msra.mxu0 %v502
    %525 = vmatprep.subr.bf16.mxu0 0
    %526 = vmatpush1.bf16.msra.mxu0 %v501
    %527 = vmatprep.subr.bf16.mxu0 0
    %528 = vmatpush1.bf16.msra.mxu0 %v500
    %529 = vmatprep.subr.bf16.mxu0 0
    %530 = vmatpush1.bf16.msra.mxu0 %v499
    %531 = vmatprep.subr.bf16.mxu0 0
    %532 = vmatpush2.bf16.msra.mxu0 0
    %533 = vmatprep.subr.bf16.mxu0 0
    %534 = vmatpush2.bf16.msra.mxu0 0
    %535 = vmatprep.subr.bf16.mxu0 0
    %536 = vmatpush2.bf16.msra.mxu0 0
    %537 = vmatprep.subr.bf16.mxu0 0
    %538 = vmatpush2.bf16.msra.mxu0 0
    %539 = vmatprep.subr.bf16.mxu0 0
    %540 = vmatpush2.bf16.msra.mxu0 0
    %541 = vmatprep.subr.bf16.mxu0 0
    %542 = vmatpush2.bf16.msra.mxu0 0
    %543 = vmatprep.subr.bf16.mxu0 0
    %544 = vmatpush2.bf16.msra.mxu0 0
    %545 = vmatprep.subr.bf16.mxu0 0
    %546 = vmatpush2.bf16.msra.mxu0 0
    %547 = vmatprep.mubr.bf16.mxu0 0
    %548 = vmatmul.mubr.bf16.gmra.mxu0 %v450
    %v549 = vpop.f32.mrf.mxu0
    %v550 = vadd.f32 0.0, %v549
    %v551 = vpop.f32.mrf.mxu0
    %v552 = vpop.f32.mrf.mxu0
    %v553 = vadd.f32 0.0, %v552
    %v554 = vpop.f32.mrf.mxu0
    %555 = vdwg.mxu0
    %v556 = vpack.c.bf16 %v553, %v550
    %v557 = vld [vmem:[%s8] sm:$0x1]
    %v559 = vlaneseq
    %v560 = vshrl.u32 %v559, 7
    %v561 = vsub.s32 0, %v560
    %v562 = vrot.slane %v557, %v561
    %564 = vmatprep.subr.bf16.mxu0 0
    %565 = vmatpush1.bf16.msra.mxu0 0
    %566 = vmatprep.subr.bf16.mxu0 0
    %567 = vmatpush1.bf16.msra.mxu0 0
    %568 = vmatprep.subr.bf16.mxu0 0
    %569 = vmatpush1.bf16.msra.mxu0 0
    %570 = vmatprep.subr.bf16.mxu0 0
    %571 = vmatpush1.bf16.msra.mxu0 0
    %572 = vmatprep.subr.bf16.mxu0 0
    %573 = vmatpush1.bf16.msra.mxu0 0
    %574 = vmatprep.subr.bf16.mxu0 0
    %575 = vmatpush1.bf16.msra.mxu0 0
    %576 = vmatprep.subr.bf16.mxu0 0
    %577 = vmatpush1.bf16.msra.mxu0 0
    %578 = vmatprep.subr.bf16.mxu0 0
    %579 = vmatpush1.bf16.msra.mxu0 %v556
    %580 = vmatprep.subr.bf16.mxu0 0
    %581 = vmatpush2.bf16.msra.mxu0 0
    %582 = vmatprep.subr.bf16.mxu0 0
    %583 = vmatpush2.bf16.msra.mxu0 0
    %584 = vmatprep.subr.bf16.mxu0 0
    %585 = vmatpush2.bf16.msra.mxu0 0
    %586 = vmatprep.subr.bf16.mxu0 0
    %587 = vmatpush2.bf16.msra.mxu0 0
    %588 = vmatprep.subr.bf16.mxu0 0
    %589 = vmatpush2.bf16.msra.mxu0 0
    %590 = vmatprep.subr.bf16.mxu0 0
    %591 = vmatpush2.bf16.msra.mxu0 0
    %592 = vmatprep.subr.bf16.mxu0 0
    %593 = vmatpush2.bf16.msra.mxu0 0
    %594 = vmatprep.subr.bf16.mxu0 0
    %595 = vmatpush2.bf16.msra.mxu0 0
    %596 = vmatprep.mubr.bf16.mxu0 0
    %597 = vmatmul.mubr.bf16.gmra.mxu0 %v235
    %v598 = vpop.f32.mrf.mxu0
    %v599 = vadd.f32 %v562, %v598
    %v600 = vpop.f32.mrf.mxu0
    %v601 = vpop.f32.mrf.mxu0
    %v602 = vadd.f32 %v562, %v601
    %v603 = vpop.f32.mrf.mxu0
    %604 = vdwg.mxu0
    %v605 = vadd.f32 %v599, %v104
    %v606 = vadd.f32 %v602, %v105
    %vm607 = vcmp.gt.f32.partialorder %v605, 0.0
    %vm608 = vcmp.gt.f32.partialorder %v606, 0.0
    %v609 = vmul.f32 %v282, %v605
    %v610 = vmul.f32 %v282, %v606
    %v611 = vsel %vm607, %v605, %v609
    %v612 = vsel %vm608, %v606, %v610
    %613 = vst [vmem:[#allocation12] sm:$0xff] %v611
    %614 = vst [vmem:[#allocation12 + $0x8] sm:$0xff] %v612
    // Predicated region
    $region58: #{tpu_custom_call.1} parent=1 // pred_check
      _
    $region59: #{tpu_custom_call.1} parent=1 // pred_check_branch
      %616 = sbr.rel (0) target = $region61
    $region60: #{tpu_custom_call.1} parent=1 // pred_region
      %s618 = ssub.s32 256, 256
      %619 = vsyncadd [#allocation5], %s618
      %s620 = sshll.u32 [#allocation12], 4
      %s621 = int_to_ptr.vmem [resolvable:$true] %s620
      %626 = dma.vmem_to_hbm [thread:$0]  %s621, 256, %s9, [#allocation5], 128, 128, 8
    $region61: #{tpu_custom_call.1} parent=1 // pred_fallthru
      _
    // Predicated region
    $region62: #{tpu_custom_call.1} parent=1 // pred_check
      _
    $region63: #{tpu_custom_call.1} parent=1 // pred_check_branch
      %628 = sbr.rel (0) target = $region65
    $region64: #{tpu_custom_call.1} parent=1 // pred_region
      %629 = dma.done [#allocation5], 256
    $region65: #{tpu_custom_call.1} parent=1 // pred_fallthru
      _
    %630 = vsyncpa [#allocation4], 1
    %631 = vsyncpa [#allocation7], 1
    %632 = vsyncpa [#allocation10], 1
    %633 = vsyncpa [#allocation5], 1

</llo_original>
